<compile_context>
chip_gen: v7x
topology: tpu7x:2x2x1
jax: 0.10.0
libtpu: 0.0.40
codegen_flags: <defaults>
</compile_context>

<pallas_src>
import jax
import jax.numpy as jnp
from jax import lax
from jax.experimental import pallas as pl
from jax.experimental.pallas import tpu as pltpu

BATCH = 8
INPUT_SIZE = 32
HIDDEN_SIZE = 64
CHUNK_NUM = 8
CHUNK_SIZE = HIDDEN_SIZE // CHUNK_NUM
GATE_SIZE = CHUNK_SIZE * 2 + HIDDEN_SIZE * 4   # 2*cs + 4*H = 272
DROPCONNECT = 0.2
SEQ_LEN = 6


def _onlstm_seq_kernel(xt_ref, h0c0_ref, whh_ref, m_ref, out_ref, state_ref):
    """One grid step == one timestep.  state_ref (VMEM scratch) carries h|c."""
    cs, H = m_ref.shape                 # chunk_size, hidden_size
    B = h0c0_ref.shape[0]
    t = pl.program_id(0)

    @pl.when(t == 0)
    def _():
        state_ref[...] = h0c0_ref[...]

    state = state_ref[...]              # (B, 2H): h in [:H], c in [H:]
    h0 = state[:, :H]
    c0 = state[:, H:]

    # Input projection + fused bias were precomputed for the whole sequence in the
    # wrapper; only the recurrent matmul runs per step.
    gates = xt_ref[0] + jnp.dot(h0, whh_ref[...],
                                preferred_element_type=jnp.float32)   # (B, GATE)

    # Reordered column layout: [ingate | forgetgate | outgate | cell | cin | cforget]
    ingate = jax.nn.sigmoid(gates[:, 0:H])
    forgetgate = jax.nn.sigmoid(gates[:, H:2 * H])
    outgate = jax.nn.sigmoid(gates[:, 2 * H:3 * H])
    cell = jnp.tanh(gates[:, 3 * H:4 * H])

    # Master gates: stacked softmax, then ONE matmul with M = tri @ expand, which
    # fuses the cumulative sum and the chunk->hidden broadcast expansion.
    cin_raw = gates[:, 4 * H:4 * H + cs]                 # (B, cs)
    cf_raw = gates[:, 4 * H + cs:4 * H + 2 * cs]         # (B, cs)
    stacked = jnp.concatenate([cin_raw, cf_raw], axis=0)  # (2B, cs)
    stacked = stacked - jnp.max(stacked, axis=-1, keepdims=True)
    e = jnp.exp(stacked)
    sm = e / jnp.sum(e, axis=-1, keepdims=True)
    cum = jnp.dot(sm, m_ref[...], preferred_element_type=jnp.float32)  # (2B, H)
    ci_b = 1.0 - cum[:B, :]             # (B, H) expanded 1 - cumsoftmax(cin)
    cf_b = cum[B:, :]                   # (B, H) expanded cumsoftmax(cforget)

    overlap = cf_b * ci_b
    forgetgate = forgetgate * overlap + (cf_b - overlap)
    ingate = ingate * overlap + (ci_b - overlap)

    c1 = forgetgate * c0 + ingate * cell
    h1 = outgate * jnp.tanh(c1)

    new_state = jnp.concatenate([h1, c1], axis=-1)   # (B, 2H) full-128-lane slab
    state_ref[...] = new_state
    out_ref[0] = new_state


def prepare_onlstm_params(w_ih, b_ih, w_hh, b_hh, dropconnect=DROPCONNECT):
    """Hoisted once-per-sequence weight prep (eval-mode LinearDropConnect scaling,
    transpose, gate-column reorder, bias fusion, fused cumsum/expand matrix)."""
    cs, cn, H = CHUNK_SIZE, CHUNK_NUM, HIDDEN_SIZE
    # Put the four H-wide gates first (offsets 0/H/2H/3H), master gates at the tail.
    perm = jnp.concatenate([jnp.arange(2 * cs, GATE_SIZE), jnp.arange(0, 2 * cs)])
    wih_t = w_ih[perm, :].T                                    # (input_size, GATE)
    whh_t = (w_hh * (1.0 - dropconnect))[perm, :].T            # (hidden_size, GATE)
    bias = (b_ih + b_hh)[perm].reshape(1, 1, GATE_SIZE)        # fused bias
    # M[k, m] = 1 iff m >= k*cn  ==  (upper-tri cumsum) @ (chunk expand)
    row = lax.broadcasted_iota(jnp.int32, (cs, H), 0)
    col = lax.broadcasted_iota(jnp.int32, (cs, H), 1)
    m_mat = (col >= row * cn).astype(jnp.float32)
    return wih_t, whh_t, bias, m_mat


def onlstm_sequence(x_seq, h0, c0, params):
    """x_seq: (T, B, input_size). Returns (h_seq, c_seq) each (T, B, hidden_size)."""
    wih_t, whh_t, bias, m_mat = params
    T, B, _ = x_seq.shape
    H = HIDDEN_SIZE
    # Batched non-recurrent input projection for all timesteps (+ fused bias):
    # (T*B, in) @ (in, GATE) runs at full MXU width in XLA.
    xt_pre = jnp.einsum('tbi,ig->tbg', x_seq, wih_t,
                        preferred_element_type=jnp.float32) + bias   # (T, B, GATE)
    h0c0 = jnp.concatenate([h0, c0], axis=-1)                        # (B, 2H)

    hc_seq = pl.pallas_call(
        _onlstm_seq_kernel,
        out_shape=jax.ShapeDtypeStruct((T, B, 2 * H), jnp.float32),
        grid_spec=pltpu.PrefetchScalarGridSpec(
            num_scalar_prefetch=0,
            grid=(T,),
            in_specs=[
                pl.BlockSpec((1, B, GATE_SIZE), lambda t: (t, 0, 0)),   # streamed x-proj
                pl.BlockSpec((B, 2 * H), lambda t: (0, 0)),             # init state (resident)
                pl.BlockSpec((H, GATE_SIZE), lambda t: (0, 0)),         # recurrent W (resident)
                pl.BlockSpec((CHUNK_SIZE, H), lambda t: (0, 0)),        # cumsum/expand M (resident)
            ],
            out_specs=pl.BlockSpec((1, B, 2 * H), lambda t: (t, 0, 0)),
            scratch_shapes=[pltpu.VMEM((B, 2 * H), jnp.float32)],        # carried h|c state
        ),
        compiler_params=pltpu.CompilerParams(dimension_semantics=("arbitrary",)),
    )(xt_pre, h0c0, whh_t, m_mat)

    return hc_seq[:, :, :H], hc_seq[:, :, H:]


def onlstm_cell(x, h0, c0, w_ih, b_ih, w_hh, b_hh, dropconnect=DROPCONNECT):
    """Single ONLSTMCell.forward step (eval mode). x: (B, input_size)."""
    params = prepare_onlstm_params(w_ih, b_ih, w_hh, b_hh, dropconnect)
    h_seq, c_seq = onlstm_sequence(x[None], h0, c0, params)
    return h_seq[0], c_seq[0]


def onlstm_ref(x, h0, c0, w_ih, b_ih, w_hh, b_hh, dropconnect=DROPCONNECT):
    """Pure-JAX reference mirroring the PyTorch forward (eval mode)."""
    cs, cn, H = CHUNK_SIZE, CHUNK_NUM, HIDDEN_SIZE
    gates = x @ w_ih.T + b_ih + h0 @ (w_hh * (1.0 - dropconnect)).T + b_hh
    cin = gates[:, :cs]
    cf = gates[:, cs:2 * cs]

    def cumsoftmax(g):
        return jnp.cumsum(jax.nn.softmax(g, axis=-1), axis=-1)

    cingate = (1.0 - cumsoftmax(cin))[:, :, None]
    cforgetgate = cumsoftmax(cf)[:, :, None]
    rest = gates[:, 2 * cs:].reshape(-1, 4 * cs, cn)
    ingate, forgetgate, outgate, cell = jnp.split(rest, 4, axis=1)
    forgetgate = jax.nn.sigmoid(forgetgate)
    ingate = jax.nn.sigmoid(ingate)
    cell = jnp.tanh(cell)
    outgate = jax.nn.sigmoid(outgate)
    overlap = cforgetgate * cingate
    forgetgate = forgetgate * overlap + (cforgetgate - overlap)
    ingate = ingate * overlap + (cingate - overlap)
    c0r = c0.reshape(-1, cs, cn)
    c1 = forgetgate * c0r + ingate * cell
    h1 = outgate * jnp.tanh(c1)
    return h1.reshape(-1, H), c1.reshape(-1, H)


# TODO(synk): training-mode LinearDropConnect (stochastic Bernoulli weight mask) is not
# implemented; only the eval-mode (1 - dropconnect) weight scaling path is kernelized.

if __name__ == "__main__":
    key = jax.random.PRNGKey(0)
    k = jax.random.split(key, 8)

    # Deterministic parameter init (PyTorch Linear-style uniform bounds).
    bound_ih = 1.0 / (INPUT_SIZE ** 0.5)
    bound_hh = 1.0 / (HIDDEN_SIZE ** 0.5)
    w_ih = jax.random.uniform(k[0], (GATE_SIZE, INPUT_SIZE), jnp.float32, -bound_ih, bound_ih)
    b_ih = jax.random.uniform(k[1], (GATE_SIZE,), jnp.float32, -bound_ih, bound_ih)
    w_hh = jax.random.uniform(k[2], (GATE_SIZE, HIDDEN_SIZE), jnp.float32, -bound_hh, bound_hh)
    b_hh = jax.random.uniform(k[3], (GATE_SIZE,), jnp.float32, -bound_hh, bound_hh)

    x_seq = jax.random.normal(k[4], (SEQ_LEN, BATCH, INPUT_SIZE), jnp.float32)
    h0 = jax.random.normal(k[5], (BATCH, HIDDEN_SIZE), jnp.float32)
    c0 = jax.random.normal(k[6], (BATCH, HIDDEN_SIZE), jnp.float32)

    # Single-step call (matches ONLSTMCell.forward semantics).
    h1, c1 = onlstm_cell(x_seq[0], h0, c0, w_ih, b_ih, w_hh, b_hh)
    jax.block_until_ready((h1, c1))
    h1_r, c1_r = onlstm_ref(x_seq[0], h0, c0, w_ih, b_ih, w_hh, b_hh)
    assert jnp.allclose(h1, h1_r, atol=1e-5, rtol=1e-5), "h1 mismatch (single step)"
    assert jnp.allclose(c1, c1_r, atol=1e-5, rtol=1e-5), "c1 mismatch (single step)"

    # Full sequence in ONE pallas_call (time loop fused into the grid).
    params = prepare_onlstm_params(w_ih, b_ih, w_hh, b_hh)
    h_seq, c_seq = onlstm_sequence(x_seq, h0, c0, params)
    jax.block_until_ready((h_seq, c_seq))
    h_r, c_r = h0, c0
    for t in range(SEQ_LEN):
        h_r, c_r = onlstm_ref(x_seq[t], h_r, c_r, w_ih, b_ih, w_hh, b_hh)
        assert jnp.allclose(h_seq[t], h_r, atol=3e-5, rtol=3e-5), f"h mismatch at step {t}"
        assert jnp.allclose(c_seq[t], c_r, atol=3e-5, rtol=3e-5), f"c mismatch at step {t}"

    print("KERNEL_OK")
</pallas_src>

<mosaic_0001>
module attributes {stable_mosaic.version = 11 : i64} {
  func.func @_onlstm_seq_kernel(%arg0: i32, %arg1: memref<1x8x272xf32, #tpu.memory_space<vmem>>, %arg2: memref<8x128xf32, #tpu.memory_space<vmem>>, %arg3: memref<64x272xf32, #tpu.memory_space<vmem>>, %arg4: memref<8x64xf32, #tpu.memory_space<vmem>>, %arg5: memref<1x8x128xf32, #tpu.memory_space<vmem>>, %arg6: memref<8x128xf32, #tpu.memory_space<vmem>>) attributes {dimension_semantics = [#tpu.dimension_semantics<arbitrary>], iteration_bounds = array<i64: 1>, scalar_prefetch = 0 : i64, scratch_operands = 1 : i64, tpu.core_type = #tpu.core_type<tc>, window_params = [{transform_indices = @transform_0, window_bounds = array<i64: 1, 8, 272>}, {pipeline_mode = #tpu.pipeline_mode<synchronous>, transform_indices = @transform_1, window_bounds = array<i64: 8, 128>}, {pipeline_mode = #tpu.pipeline_mode<synchronous>, transform_indices = @transform_2, window_bounds = array<i64: 64, 272>}, {pipeline_mode = #tpu.pipeline_mode<synchronous>, transform_indices = @transform_3, window_bounds = array<i64: 8, 64>}, {transform_indices = @transform_4, window_bounds = array<i64: 1, 8, 128>}]} {
    %c0_i32 = arith.constant 0 : i32
    %0 = arith.cmpi eq, %arg0, %c0_i32 : i32
    %1 = arith.extui %0 : i1 to i32
    %c0_i32_0 = arith.constant 0 : i32
    %2 = arith.cmpi ne, %1, %c0_i32_0 : i32
    scf.if %2 {
      %c0_21 = arith.constant 0 : index
      %c0_22 = arith.constant 0 : index
      %66 = vector.load %arg2[%c0_21, %c0_22] : memref<8x128xf32, #tpu.memory_space<vmem>>, vector<8x128xf32>
      %c0_23 = arith.constant 0 : index
      %c0_24 = arith.constant 0 : index
      %67 = vector.load %arg6[%c0_23, %c0_24] : memref<8x128xf32, #tpu.memory_space<vmem>>, vector<8x128xf32>
      tpu.vector_store %arg6[%c0_23, %c0_24], %66 {strides = array<i32>} : memref<8x128xf32, #tpu.memory_space<vmem>>, vector<8x128xf32>,
    } else {
    }
    %c0 = arith.constant 0 : index
    %c0_1 = arith.constant 0 : index
    %3 = vector.load %arg6[%c0, %c0_1] : memref<8x128xf32, #tpu.memory_space<vmem>>, vector<8x128xf32>
    %4 = vector.extract_strided_slice %3 {offsets = [0, 0], sizes = [8, 64], strides = [1, 1]} : vector<8x128xf32> to vector<8x64xf32>
    %5 = vector.extract_strided_slice %3 {offsets = [0, 64], sizes = [8, 64], strides = [1, 1]} : vector<8x128xf32> to vector<8x64xf32>
    %c0_2 = arith.constant 0 : index
    %c0_3 = arith.constant 0 : index
    %c0_4 = arith.constant 0 : index
    %6 = vector.load %arg1[%c0_2, %c0_3, %c0_4] : memref<1x8x272xf32, #tpu.memory_space<vmem>>, vector<1x8x272xf32>
    %7 = vector.shape_cast %6 : vector<1x8x272xf32> to vector<8x272xf32>
    %c0_5 = arith.constant 0 : index
    %c0_6 = arith.constant 0 : index
    %8 = vector.load %arg3[%c0_5, %c0_6] : memref<64x272xf32, #tpu.memory_space<vmem>>, vector<64x272xf32>
    %cst = arith.constant dense<0.000000e+00> : vector<8x272xf32>
    %9 = tpu.matmul %4, %8, %cst {dimension_numbers = #tpu.dot_dimension_numbers<[1], [0], [0], [1], [0, 0, 1, 1], [], []>} : vector<8x64xf32>, vector<64x272xf32>, vector<8x272xf32> -> vector<8x272xf32>
    %10 = arith.addf %7, %9 : vector<8x272xf32>
    %11 = vector.extract_strided_slice %10 {offsets = [0, 0], sizes = [8, 64], strides = [1, 1]} : vector<8x272xf32> to vector<8x64xf32>
    %12 = arith.negf %11 : vector<8x64xf32>
    %13 = math.exp %12 : vector<8x64xf32>
    %cst_7 = arith.constant 1.000000e+00 : f32
    %14 = vector.broadcast %cst_7 : f32 to vector<8x64xf32>
    %15 = arith.addf %14, %13 : vector<8x64xf32>
    %16 = arith.divf %14, %15 : vector<8x64xf32>
    %17 = vector.extract_strided_slice %10 {offsets = [0, 64], sizes = [8, 64], strides = [1, 1]} : vector<8x272xf32> to vector<8x64xf32>
    %18 = arith.negf %17 : vector<8x64xf32>
    %19 = math.exp %18 : vector<8x64xf32>
    %cst_8 = arith.constant 1.000000e+00 : f32
    %20 = vector.broadcast %cst_8 : f32 to vector<8x64xf32>
    %21 = arith.addf %20, %19 : vector<8x64xf32>
    %22 = arith.divf %20, %21 : vector<8x64xf32>
    %23 = vector.extract_strided_slice %10 {offsets = [0, 128], sizes = [8, 64], strides = [1, 1]} : vector<8x272xf32> to vector<8x64xf32>
    %24 = arith.negf %23 : vector<8x64xf32>
    %25 = math.exp %24 : vector<8x64xf32>
    %cst_9 = arith.constant 1.000000e+00 : f32
    %26 = vector.broadcast %cst_9 : f32 to vector<8x64xf32>
    %27 = arith.addf %26, %25 : vector<8x64xf32>
    %28 = arith.divf %26, %27 : vector<8x64xf32>
    %29 = vector.extract_strided_slice %10 {offsets = [0, 192], sizes = [8, 64], strides = [1, 1]} : vector<8x272xf32> to vector<8x64xf32>
    %30 = math.tanh %29 : vector<8x64xf32>
    %31 = vector.extract_strided_slice %10 {offsets = [0, 256], sizes = [8, 8], strides = [1, 1]} : vector<8x272xf32> to vector<8x8xf32>
    %32 = vector.extract_strided_slice %10 {offsets = [0, 264], sizes = [8, 8], strides = [1, 1]} : vector<8x272xf32> to vector<8x8xf32>
    %33 = tpu.concatenate %31, %32 in 0 : vector<8x8xf32>, vector<8x8xf32> -> vector<16x8xf32>
    %cst_10 = arith.constant dense<0xFF800000> : vector<16xf32>
    %34 = vector.multi_reduction <maximumf>, %33, %cst_10 [1] : vector<16x8xf32> to vector<16xf32>
    %35 = vector.shape_cast %34 : vector<16xf32> to vector<16x1xf32>
    %36 = vector.broadcast %35 : vector<16x1xf32> to vector<16x8xf32>
    %37 = arith.subf %33, %36 : vector<16x8xf32>
    %38 = math.exp %37 : vector<16x8xf32>
    %cst_11 = arith.constant dense<0.000000e+00> : vector<16xf32>
    %39 = vector.multi_reduction <add>, %38, %cst_11 [1] : vector<16x8xf32> to vector<16xf32>
    %40 = vector.shape_cast %39 : vector<16xf32> to vector<16x1xf32>
    %41 = vector.broadcast %40 : vector<16x1xf32> to vector<16x8xf32>
    %42 = arith.divf %38, %41 : vector<16x8xf32>
    %c0_12 = arith.constant 0 : index
    %c0_13 = arith.constant 0 : index
    %43 = vector.load %arg4[%c0_12, %c0_13] : memref<8x64xf32, #tpu.memory_space<vmem>>, vector<8x64xf32>
    %cst_14 = arith.constant dense<0.000000e+00> : vector<16x64xf32>
    %44 = tpu.matmul %42, %43, %cst_14 {dimension_numbers = #tpu.dot_dimension_numbers<[1], [0], [0], [1], [0, 0, 1, 1], [], []>} : vector<16x8xf32>, vector<8x64xf32>, vector<16x64xf32> -> vector<16x64xf32>
    %45 = vector.extract_strided_slice %44 {offsets = [0, 0], sizes = [8, 64], strides = [1, 1]} : vector<16x64xf32> to vector<8x64xf32>
    %cst_15 = arith.constant 1.000000e+00 : f32
    %46 = vector.broadcast %cst_15 : f32 to vector<8x64xf32>
    %47 = arith.subf %46, %45 : vector<8x64xf32>
    %48 = vector.extract_strided_slice %44 {offsets = [8, 0], sizes = [8, 64], strides = [1, 1]} : vector<16x64xf32> to vector<8x64xf32>
    %49 = arith.mulf %48, %47 : vector<8x64xf32>
    %50 = arith.mulf %22, %49 : vector<8x64xf32>
    %51 = arith.subf %48, %49 : vector<8x64xf32>
    %52 = arith.addf %50, %51 : vector<8x64xf32>
    %53 = arith.mulf %16, %49 : vector<8x64xf32>
    %54 = arith.subf %47, %49 : vector<8x64xf32>
    %55 = arith.addf %53, %54 : vector<8x64xf32>
    %56 = arith.mulf %52, %5 : vector<8x64xf32>
    %57 = arith.mulf %55, %30 : vector<8x64xf32>
    %58 = arith.addf %56, %57 : vector<8x64xf32>
    %59 = math.tanh %58 : vector<8x64xf32>
    %60 = arith.mulf %28, %59 : vector<8x64xf32>
    %61 = tpu.concatenate %60, %58 in 1 : vector<8x64xf32>, vector<8x64xf32> -> vector<8x128xf32>
    %c0_16 = arith.constant 0 : index
    %c0_17 = arith.constant 0 : index
    %62 = vector.load %arg6[%c0_16, %c0_17] : memref<8x128xf32, #tpu.memory_space<vmem>>, vector<8x128xf32>
    tpu.vector_store %arg6[%c0_16, %c0_17], %61 {strides = array<i32>} : memref<8x128xf32, #tpu.memory_space<vmem>>, vector<8x128xf32>,
    %c0_18 = arith.constant 0 : index
    %c0_19 = arith.constant 0 : index
    %c0_20 = arith.constant 0 : index
    %63 = vector.load %arg5[%c0_18, %c0_19, %c0_20] : memref<1x8x128xf32, #tpu.memory_space<vmem>>, vector<1x8x128xf32>
    %64 = vector.shape_cast %63 : vector<1x8x128xf32> to vector<8x128xf32>
    %65 = vector.shape_cast %61 : vector<8x128xf32> to vector<1x8x128xf32>
    tpu.vector_store %arg5[%c0_18, %c0_19, %c0_20], %65 {strides = array<i32>} : memref<1x8x128xf32, #tpu.memory_space<vmem>>, vector<1x8x128xf32>,
    return
  }
  func.func @transform_0(%arg0: i32) -> (i32, i32, i32) {
    %c0_i32 = arith.constant 0 : i32
    %c0_i32_0 = arith.constant 0 : i32
    %c0_i32_1 = arith.constant 0 : i32
    return %arg0, %c0_i32, %c0_i32_0 : i32, i32, i32
  }
  func.func @transform_1(%arg0: i32) -> (i32, i32) {
    %c0_i32 = arith.constant 0 : i32
    %c0_i32_0 = arith.constant 0 : i32
    %c0_i32_1 = arith.constant 0 : i32
    return %c0_i32, %c0_i32_0 : i32, i32
  }
  func.func @transform_2(%arg0: i32) -> (i32, i32) {
    %c0_i32 = arith.constant 0 : i32
    %c0_i32_0 = arith.constant 0 : i32
    %c0_i32_1 = arith.constant 0 : i32
    return %c0_i32, %c0_i32_0 : i32, i32
  }
  func.func @transform_3(%arg0: i32) -> (i32, i32) {
    %c0_i32 = arith.constant 0 : i32
    %c0_i32_0 = arith.constant 0 : i32
    %c0_i32_1 = arith.constant 0 : i32
    return %c0_i32, %c0_i32_0 : i32, i32
  }
  func.func @transform_4(%arg0: i32) -> (i32, i32, i32) {
    %c0_i32 = arith.constant 0 : i32
    %c0_i32_0 = arith.constant 0 : i32
    %c0_i32_1 = arith.constant 0 : i32
    return %arg0, %c0_i32, %c0_i32_0 : i32, i32, i32
  }
}

</mosaic_0001>

<llo_original>
// kernel: tpu_custom_call.1
$region0: #{tpu_custom_call.1}
  #allocation0 [shape = 'u32[]', space=smem, size = 0x4, offset = 0x4, fixed_abs, tag = 'smem constant byte address 0x4 - core index']
  #allocation1 [shape = 'u32[144,128]{1,0:T(1,128)}', space=vmem, size = 0x12000, scoped, tag = 'internal scratch']
  #allocation2 [shape = 'f32[8,128]{1,0:T(8,128)}', space=vmem, size = 0x1000, scoped, tag = 'scratch operand']
  %s0 = inlined_call_operand.hbm [shape: f32[1,8,272], index: 0, kind: input, shape index: {}]
  %s1 = inlined_call_operand.hbm [shape: f32[8,128], index: 1, kind: input, shape index: {}]
  %s2 = inlined_call_operand.hbm [shape: f32[64,272], index: 2, kind: input, shape index: {}]
  %s3 = inlined_call_operand.vmem [shape: f32[8,64], index: 3, kind: input, shape index: {}]
  %s4 = inlined_call_operand.hbm [shape: f32[1,8,128], index: 4, kind: output, shape index: {}]
  %s5 = sld [smem:[#allocation0]]
  $region42: #{tpu_custom_call.1} parent=0
    _
  %s7 = ssub.s32 1, %s5
  %s8 = scalar_select 0, %s7, %s5
  $region1: #{tpu_custom_call.1} parent=0
    #allocation3 [shape = 'u8[12288]{0}', space=vmem, size = 0x3000, scoped, tag = 'input window, operand 0, single buffered']
    #allocation4 [shape = 's32[1]{0}', space=sflag, size = 0x4, scoped, tag = 'scoped memory for tpu_custom_call.1']
    #allocation5 [shape = 's32[1]{0}', space=sflag, size = 0x4, scoped, tag = 'scoped memory for tpu_custom_call.1']
    #allocation6 [shape = 'u8[4096]{0}', space=vmem, size = 0x1000, scoped, tag = 'input window, operand 1, single buffered']
    #allocation7 [shape = 's32[1]{0}', space=sflag, size = 0x4, scoped, tag = 'scoped memory for tpu_custom_call.1']
    #allocation8 [shape = 'u8[98304]{0}', space=vmem, size = 0x18000, scoped, tag = 'input window, operand 2, single buffered']
    #allocation9 [shape = 'u8[4096]{0}', space=vmem, size = 0x1000, scoped, tag = 'output window, operand 0, single buffered']
    %9 = vsyncpa [#allocation4], 0
    %10 = vsyncpa [#allocation7], 0
    %11 = vsyncpa [#allocation5], 0
    // Predicated region
    $region2: #{tpu_custom_call.1} parent=1 // pred_check
      _
    $region3: #{tpu_custom_call.1} parent=1 // pred_check_branch
      %13 = sbr.rel (0) target = $region5
    $region4: #{tpu_custom_call.1} parent=1 // pred_region
      %s15 = ssub.s32 384, 384
      %16 = vsyncadd [#allocation4], %s15
      %s18 = sshll.u32 [#allocation3], 4
      %s19 = int_to_ptr.vmem [resolvable:$true] %s18
      %21 = dma.hbm_to_vmem [thread:$0]  %s0, 384, %s19, [#allocation4]
    $region5: #{tpu_custom_call.1} parent=1 // pred_fallthru
      _
    // Predicated region
    $region6: #{tpu_custom_call.1} parent=1 // pred_check
      _
    $region7: #{tpu_custom_call.1} parent=1 // pred_check_branch
      %23 = sbr.rel (0) target = $region9
    $region8: #{tpu_custom_call.1} parent=1 // pred_region
      %s25 = ssub.s32 128, 128
      %26 = vsyncadd [#allocation7], %s25
      %s28 = sshll.u32 [#allocation6], 4
      %s29 = int_to_ptr.vmem [resolvable:$true] %s28
      %31 = dma.hbm_to_vmem [thread:$0]  %s1, 128, %s29, [#allocation7]
    $region9: #{tpu_custom_call.1} parent=1 // pred_fallthru
      _
    // Predicated region
    $region10: #{tpu_custom_call.1} parent=1 // pred_check
      _
    $region11: #{tpu_custom_call.1} parent=1 // pred_check_branch
      %33 = sbr.rel (0) target = $region13
    $region12: #{tpu_custom_call.1} parent=1 // pred_region
      %s35 = ssub.s32 3072, 3072
      %36 = vsyncadd [#allocation7], %s35
      %s37 = sshll.u32 [#allocation8], 4
      %s38 = int_to_ptr.vmem [resolvable:$true] %s37
      %43 = dma.hbm_to_vmem [thread:$0]  %s2, 3072, %s38, [#allocation7], 384, 384, 24
    $region13: #{tpu_custom_call.1} parent=1 // pred_fallthru
      _
    // Predicated region
    $region14: #{tpu_custom_call.1} parent=1 // pred_check
      _
    $region15: #{tpu_custom_call.1} parent=1 // pred_check_branch
      %45 = sbr.rel (0) target = $region17
    $region16: #{tpu_custom_call.1} parent=1 // pred_region
      _
    $region17: #{tpu_custom_call.1} parent=1 // pred_fallthru
      _
    // Predicated region
    $region18: #{tpu_custom_call.1} parent=1 // pred_check
      _
    $region19: #{tpu_custom_call.1} parent=1 // pred_check_branch
      %47 = sbr.rel (0) target = $region21
    $region20: #{tpu_custom_call.1} parent=1 // pred_region
      %48 = dma.done [#allocation4], 384
    $region21: #{tpu_custom_call.1} parent=1 // pred_fallthru
      _
    // Predicated region
    $region22: #{tpu_custom_call.1} parent=1 // pred_check
      _
    $region23: #{tpu_custom_call.1} parent=1 // pred_check_branch
      %50 = sbr.rel (0) target = $region25
    $region24: #{tpu_custom_call.1} parent=1 // pred_region
      %51 = dma.done [#allocation7], 128
    $region25: #{tpu_custom_call.1} parent=1 // pred_fallthru
      _
    // Predicated region
    $region26: #{tpu_custom_call.1} parent=1 // pred_check
      _
    $region27: #{tpu_custom_call.1} parent=1 // pred_check_branch
      %53 = sbr.rel (0) target = $region29
    $region28: #{tpu_custom_call.1} parent=1 // pred_region
      %54 = dma.done [#allocation7], 3072
    $region29: #{tpu_custom_call.1} parent=1 // pred_fallthru
      _
    %p55 = scmp.eq.s32.totalorder 0, 0
    // Predicated region
    $region30: #{tpu_custom_call.1} parent=1 // pred_check
      %p56 = pneg %p55
    $region31: #{tpu_custom_call.1} parent=1 // pred_check_branch
      %58 = sbr.rel (%p56) target = $region33
    $region32: #{tpu_custom_call.1} parent=1 // pred_region
      %v59 = vld [vmem:[#allocation6] sm:$0xff]
      %60 = vst [vmem:[#allocation2] sm:$0xff] %v59
    $region33: #{tpu_custom_call.1} parent=1 // pred_fallthru
      _
    %v61 = vld [vmem:[#allocation2] sm:$0xff]
    %v62 = vld [vmem:[#allocation3] sm:$0xff]
    %v63 = vld [vmem:[#allocation3 + $0x8] sm:$0xff]
    %v64 = vld [vmem:[#allocation3 + $0x10] sm:$0xff]
    %v65 = vld [vmem:[#allocation8] sm:$0xff]
    %v66 = vld [vmem:[#allocation8 + $0x8] sm:$0xff]
    %v67 = vld [vmem:[#allocation8 + $0x10] sm:$0xff]
    %v68 = vld [vmem:[#allocation8 + $0x18] sm:$0xff]
    %v69 = vld [vmem:[#allocation8 + $0x20] sm:$0xff]
    %v70 = vld [vmem:[#allocation8 + $0x28] sm:$0xff]
    %v71 = vld [vmem:[#allocation8 + $0x30] sm:$0xff]
    %v72 = vld [vmem:[#allocation8 + $0x38] sm:$0xff]
    %v73 = vld [vmem:[#allocation8 + $0x40] sm:$0xff]
    %v74 = vld [vmem:[#allocation8 + $0x48] sm:$0xff]
    %v75 = vld [vmem:[#allocation8 + $0x50] sm:$0xff]
    %v76 = vld [vmem:[#allocation8 + $0x58] sm:$0xff]
    %v77 = vld [vmem:[#allocation8 + $0x60] sm:$0xff]
    %v78 = vld [vmem:[#allocation8 + $0x68] sm:$0xff]
    %v79 = vld [vmem:[#allocation8 + $0x70] sm:$0xff]
    %v80 = vld [vmem:[#allocation8 + $0x78] sm:$0xff]
    %v81 = vld [vmem:[#allocation8 + $0x80] sm:$0xff]
    %v82 = vld [vmem:[#allocation8 + $0x88] sm:$0xff]
    %v83 = vld [vmem:[#allocation8 + $0x90] sm:$0xff]
    %v84 = vld [vmem:[#allocation8 + $0x98] sm:$0xff]
    %v85 = vld [vmem:[#allocation8 + $0xa0] sm:$0xff]
    %v86 = vld [vmem:[#allocation8 + $0xa8] sm:$0xff]
    %v87 = vld [vmem:[#allocation8 + $0xb0] sm:$0xff]
    %v88 = vld [vmem:[#allocation8 + $0xb8] sm:$0xff]
    %vm89 = vcmask 523264
    %v91 = vsel %vm89, %v61, 0
    %93 = vmatprep.subr.mxu0 %v66
    %94 = vmatpush1.msra.mxu0 %v65
    %95 = vmatprep.subr.mxu0 %v69
    %96 = vmatpush1.msra.mxu0 %v68
    %97 = vmatprep.subr.mxu0 %v72
    %98 = vmatpush1.msra.mxu0 %v71
    %99 = vmatprep.subr.mxu0 %v75
    %100 = vmatpush1.msra.mxu0 %v74
    %101 = vmatprep.subr.mxu0 %v78
    %102 = vmatpush1.msra.mxu0 %v77
    %103 = vmatprep.subr.mxu0 %v81
    %104 = vmatpush1.msra.mxu0 %v80
    %105 = vmatprep.subr.mxu0 %v84
    %106 = vmatpush1.msra.mxu0 %v83
    %107 = vmatprep.subr.mxu0 %v87
    %108 = vmatpush1.msra.mxu0 %v86
    %109 = vmatprep.subr.mxu0 0.0
    %110 = vmatpush1.msra.mxu0 0.0
    %111 = vmatprep.subr.mxu0 0.0
    %112 = vmatpush1.msra.mxu0 0.0
    %113 = vmatprep.subr.mxu0 0.0
    %114 = vmatpush1.msra.mxu0 0.0
    %115 = vmatprep.subr.mxu0 0.0
    %116 = vmatpush1.msra.mxu0 0.0
    %117 = vmatprep.subr.mxu0 0.0
    %118 = vmatpush1.msra.mxu0 0.0
    %119 = vmatprep.subr.mxu0 0.0
    %120 = vmatpush1.msra.mxu0 0.0
    %121 = vmatprep.subr.mxu0 0.0
    %122 = vmatpush1.msra.mxu0 0.0
    %123 = vmatprep.subr.mxu0 0.0
    %124 = vmatpush1.msra.mxu0 0.0
    %125 = vmatprep.subr.mxu0 0.0
    %126 = vmatpush1.msra.mxu0 0.0
    %127 = vmatprep.subr.mxu0 0.0
    %128 = vmatpush1.msra.mxu0 0.0
    %129 = vmatprep.subr.mxu0 0.0
    %130 = vmatpush1.msra.mxu0 0.0
    %131 = vmatprep.subr.mxu0 0.0
    %132 = vmatpush1.msra.mxu0 0.0
    %133 = vmatprep.subr.mxu0 0.0
    %134 = vmatpush1.msra.mxu0 0.0
    %135 = vmatprep.subr.mxu0 0.0
    %136 = vmatpush1.msra.mxu0 0.0
    %137 = vmatprep.subr.mxu0 0.0
    %138 = vmatpush1.msra.mxu0 0.0
    %139 = vmatprep.subr.mxu0 0.0
    %140 = vmatpush1.msra.mxu0 0.0
    %141 = vmatprep.subr.mxu0 0.0
    %142 = vmatpush1.msra.mxu0 0.0
    %143 = vmatprep.subr.mxu0 0.0
    %144 = vmatpush1.msra.mxu0 0.0
    %145 = vmatprep.subr.mxu0 0.0
    %146 = vmatpush1.msra.mxu0 0.0
    %147 = vmatprep.subr.mxu0 0.0
    %148 = vmatpush1.msra.mxu0 0.0
    %149 = vmatprep.subr.mxu0 0.0
    %150 = vmatpush1.msra.mxu0 0.0
    %151 = vmatprep.subr.mxu0 0.0
    %152 = vmatpush1.msra.mxu0 0.0
    %153 = vmatprep.subr.mxu0 0.0
    %154 = vmatpush1.msra.mxu0 0.0
    %155 = vmatprep.subr.mxu0 0.0
    %156 = vmatpush1.msra.mxu0 0.0
    %157 = vmatprep.mubr.f32.mxu0 0.0
    %158 = vmatmul.mubr.f32.gmra.mrb[0].mxu0 %v91
    %v159 = vpop.f32.mrb[0].mxu0
    %v160 = vadd.f32 0.0, %v159
    %v161 = vpop.f32.mrb[0].mxu0
    %v162 = vadd.f32 0.0, %v161
    %163 = vdwg.mxu0
    %164 = vmatprep.subr.mxu0 0.0
    %165 = vmatpush1.msra.mxu0 %v67
    %166 = vmatprep.subr.mxu0 0.0
    %167 = vmatpush1.msra.mxu0 %v70
    %168 = vmatprep.subr.mxu0 0.0
    %169 = vmatpush1.msra.mxu0 %v73
    %170 = vmatprep.subr.mxu0 0.0
    %171 = vmatpush1.msra.mxu0 %v76
    %172 = vmatprep.subr.mxu0 0.0
    %173 = vmatpush1.msra.mxu0 %v79
    %174 = vmatprep.subr.mxu0 0.0
    %175 = vmatpush1.msra.mxu0 %v82
    %176 = vmatprep.subr.mxu0 0.0
    %177 = vmatpush1.msra.mxu0 %v85
    %178 = vmatprep.subr.mxu0 0.0
    %179 = vmatpush1.msra.mxu0 %v88
    %180 = vmatprep.subr.mxu0 0.0
    %181 = vmatpush1.msra.mxu0 0.0
    %182 = vmatprep.subr.mxu0 0.0
    %183 = vmatpush1.msra.mxu0 0.0
    %184 = vmatprep.subr.mxu0 0.0
    %185 = vmatpush1.msra.mxu0 0.0
    %186 = vmatprep.subr.mxu0 0.0
    %187 = vmatpush1.msra.mxu0 0.0
    %188 = vmatprep.subr.mxu0 0.0
    %189 = vmatpush1.msra.mxu0 0.0
    %190 = vmatprep.subr.mxu0 0.0
    %191 = vmatpush1.msra.mxu0 0.0
    %192 = vmatprep.subr.mxu0 0.0
    %193 = vmatpush1.msra.mxu0 0.0
    %194 = vmatprep.subr.mxu0 0.0
    %195 = vmatpush1.msra.mxu0 0.0
    %196 = vmatprep.subr.mxu0 0.0
    %197 = vmatpush1.msra.mxu0 0.0
    %198 = vmatprep.subr.mxu0 0.0
    %199 = vmatpush1.msra.mxu0 0.0
    %200 = vmatprep.subr.mxu0 0.0
    %201 = vmatpush1.msra.mxu0 0.0
    %202 = vmatprep.subr.mxu0 0.0
    %203 = vmatpush1.msra.mxu0 0.0
    %204 = vmatprep.subr.mxu0 0.0
    %205 = vmatpush1.msra.mxu0 0.0
    %206 = vmatprep.subr.mxu0 0.0
    %207 = vmatpush1.msra.mxu0 0.0
    %208 = vmatprep.subr.mxu0 0.0
    %209 = vmatpush1.msra.mxu0 0.0
    %210 = vmatprep.subr.mxu0 0.0
    %211 = vmatpush1.msra.mxu0 0.0
    %212 = vmatprep.subr.mxu0 0.0
    %213 = vmatpush1.msra.mxu0 0.0
    %214 = vmatprep.subr.mxu0 0.0
    %215 = vmatpush1.msra.mxu0 0.0
    %216 = vmatprep.subr.mxu0 0.0
    %217 = vmatpush1.msra.mxu0 0.0
    %218 = vmatprep.subr.mxu0 0.0
    %219 = vmatpush1.msra.mxu0 0.0
    %220 = vmatprep.subr.mxu0 0.0
    %221 = vmatpush1.msra.mxu0 0.0
    %222 = vmatprep.subr.mxu0 0.0
    %223 = vmatpush1.msra.mxu0 0.0
    %224 = vmatprep.subr.mxu0 0.0
    %225 = vmatpush1.msra.mxu0 0.0
    %226 = vmatprep.subr.mxu0 0.0
    %227 = vmatpush1.msra.mxu0 0.0
    %228 = vmatprep.mubr.f32.mxu0 0.0
    %229 = vmatmul.mubr.f32.gmra.mrb[0].mxu0 %v91
    %v230 = vpop.f32.mrb[0].mxu0
    %v231 = vadd.f32 0.0, %v230
    %v232 = vpop.f32.mrb[0].mxu0
    %233 = vdwg.mxu0
    %v234 = vadd.f32 %v62, %v160
    %v235 = vadd.f32 %v63, %v162
    %v236 = vadd.f32 %v64, %v231
    %v237 = vxor.u32 %v234, 2147483648
    %v238 = vmul.f32 %v237, 1.442695
    %v239 = vpow.pop %v238
    %v240 = vadd.f32 %v239, 1.0
    %v241 = vrcp.pop %v240
    %v242 = vmul.f32 1.0, %v241
    %v243 = vxor.u32 %v235, 2147483648
    %v244 = vmul.f32 %v243, 1.442695
    %v245 = vpow.pop %v244
    %v246 = vadd.f32 %v245, 1.0
    %v247 = vrcp.pop %v246
    %v248 = vmul.f32 1.0, %v247
    %v249 = vtanh.pop %v235
    %251 = vrot.lane.b32.xlu0 %v236, 120
    %v252 = vpop.permute.xlu0 %251
    %vm254 = vcmask 64512
    %v255 = vsel %vm254, %v236, -inf
    %256 = vmax.xlane.f32.xlu0 %v255
    %v257 = vpop.xlane.xlu0 %256
    %v258 = vsel %vm254, %v252, -inf
    %259 = vmax.xlane.f32.xlu0 %v258
    %v260 = vpop.xlane.xlu0 %259
    %v261 = vsub.f32 %v236, %v257
    %v262 = vsub.f32 %v252, %v260
    %v263 = vmul.f32 %v261, 1.442695
    %v264 = vpow.pop %v263
    %v265 = vmul.f32 %v262, 1.442695
    %v266 = vpow.pop %v265
    %v267 = vsel %vm254, %v264, 0.0
    %268 = vadd.xlane.f32.xlu0 %v267
    %v269 = vpop.xlane.xlu0 %268
    %v270 = vsel %vm254, %v266, 0.0
    %271 = vadd.xlane.f32.xlu0 %v270
    %v272 = vpop.xlane.xlu0 %271
    %v273 = vrcp.pop %v269
    %v274 = vmul.f32 %v264, %v273
    %v275 = vrcp.pop %v272
    %v276 = vmul.f32 %v266, %v275
    %v277 = vld [vmem:[%s3] sm:$0xff]
    %v279 = vsel %vm254, %v274, 0
    %v282 = vsel %vm254, %v276, 0
    %284 = vmatprep.subr.mxu0 0.0
    %285 = vmatpush1.msra.mxu0 %v277
    %286 = vmatprep.subr.mxu0 0.0
    %287 = vmatpush1.msra.mxu0 0.0
    %288 = vmatprep.subr.mxu0 0.0
    %289 = vmatpush1.msra.mxu0 0.0
    %290 = vmatprep.subr.mxu0 0.0
    %291 = vmatpush1.msra.mxu0 0.0
    %292 = vmatprep.subr.mxu0 0.0
    %293 = vmatpush1.msra.mxu0 0.0
    %294 = vmatprep.subr.mxu0 0.0
    %295 = vmatpush1.msra.mxu0 0.0
    %296 = vmatprep.subr.mxu0 0.0
    %297 = vmatpush1.msra.mxu0 0.0
    %298 = vmatprep.subr.mxu0 0.0
    %299 = vmatpush1.msra.mxu0 0.0
    %300 = vmatprep.subr.mxu0 0.0
    %301 = vmatpush1.msra.mxu0 0.0
    %302 = vmatprep.subr.mxu0 0.0
    %303 = vmatpush1.msra.mxu0 0.0
    %304 = vmatprep.subr.mxu0 0.0
    %305 = vmatpush1.msra.mxu0 0.0
    %306 = vmatprep.subr.mxu0 0.0
    %307 = vmatpush1.msra.mxu0 0.0
    %308 = vmatprep.subr.mxu0 0.0
    %309 = vmatpush1.msra.mxu0 0.0
    %310 = vmatprep.subr.mxu0 0.0
    %311 = vmatpush1.msra.mxu0 0.0
    %312 = vmatprep.subr.mxu0 0.0
    %313 = vmatpush1.msra.mxu0 0.0
    %314 = vmatprep.subr.mxu0 0.0
    %315 = vmatpush1.msra.mxu0 0.0
    %316 = vmatprep.subr.mxu0 0.0
    %317 = vmatpush1.msra.mxu0 0.0
    %318 = vmatprep.subr.mxu0 0.0
    %319 = vmatpush1.msra.mxu0 0.0
    %320 = vmatprep.subr.mxu0 0.0
    %321 = vmatpush1.msra.mxu0 0.0
    %322 = vmatprep.subr.mxu0 0.0
    %323 = vmatpush1.msra.mxu0 0.0
    %324 = vmatprep.subr.mxu0 0.0
    %325 = vmatpush1.msra.mxu0 0.0
    %326 = vmatprep.subr.mxu0 0.0
    %327 = vmatpush1.msra.mxu0 0.0
    %328 = vmatprep.subr.mxu0 0.0
    %329 = vmatpush1.msra.mxu0 0.0
    %330 = vmatprep.subr.mxu0 0.0
    %331 = vmatpush1.msra.mxu0 0.0
    %332 = vmatprep.subr.mxu0 0.0
    %333 = vmatpush1.msra.mxu0 0.0
    %334 = vmatprep.subr.mxu0 0.0
    %335 = vmatpush1.msra.mxu0 0.0
    %336 = vmatprep.subr.mxu0 0.0
    %337 = vmatpush1.msra.mxu0 0.0
    %338 = vmatprep.subr.mxu0 0.0
    %339 = vmatpush1.msra.mxu0 0.0
    %340 = vmatprep.subr.mxu0 0.0
    %341 = vmatpush1.msra.mxu0 0.0
    %342 = vmatprep.subr.mxu0 0.0
    %343 = vmatpush1.msra.mxu0 0.0
    %344 = vmatprep.subr.mxu0 0.0
    %345 = vmatpush1.msra.mxu0 0.0
    %346 = vmatprep.subr.mxu0 0.0
    %347 = vmatpush1.msra.mxu0 0.0
    %348 = vmatprep.mubr.f32.mxu0 0.0
    %349 = vmatmul.mubr.f32.gmra.mrb[0].mxu0 %v279
    %v350 = vpop.f32.mrb[0].mxu0
    %v351 = vadd.f32 0.0, %v350
    %v352 = vpop.f32.mrb[0].mxu0
    %353 = vmatprep.mubr.f32.mxu0 0.0
    %354 = vmatmul.mubr.f32.gmra.mrb[0].mxu0 %v282
    %v355 = vpop.f32.mrb[0].mxu0
    %v356 = vadd.f32 0.0, %v355
    %v357 = vpop.f32.mrb[0].mxu0
    %358 = vdwg.mxu0
    %v359 = vsub.f32 1.0, %v351
    %v360 = vmul.f32 %v356, %v359
    %362 = vrot.lane.b32.xlu0 %v360, 64
    %v363 = vpop.permute.xlu0 %362
    %v365 = vmul.f32 %v242, %v363
    %v366 = vsub.f32 %v356, %v360
    %368 = vrot.lane.b32.xlu0 %v366, 64
    %v369 = vpop.permute.xlu0 %368
    %v371 = vadd.f32 %v365, %v369
    %v372 = vmul.f32 %v242, %v360
    %v373 = vsub.f32 %v359, %v360
    %v374 = vadd.f32 %v372, %v373
    %v375 = vmul.f32 %v371, %v61
    %377 = vrot.lane.b32.xlu0 %v249, 64
    %v378 = vpop.permute.xlu0 %377
    %v380 = vmul.f32 %v374, %v378
    %382 = vrot.lane.b32.xlu0 %v380, 64
    %v383 = vpop.permute.xlu0 %382
    %v385 = vadd.f32 %v375, %v383
    %v386 = vtanh.pop %v385
    %388 = vrot.lane.b32.xlu0 %v386, 64
    %v389 = vpop.permute.xlu0 %388
    %v391 = vmul.f32 %v248, %v389
    %v392 = vsel %vm89, %v391, %v385
    %393 = vst [vmem:[#allocation2] sm:$0xff] %v392
    %394 = vst [vmem:[#allocation9] sm:$0xff] %v392
    // Predicated region
    $region34: #{tpu_custom_call.1} parent=1 // pred_check
      _
    $region35: #{tpu_custom_call.1} parent=1 // pred_check_branch
      %396 = sbr.rel (0) target = $region37
    $region36: #{tpu_custom_call.1} parent=1 // pred_region
      %s398 = ssub.s32 128, 128
      %399 = vsyncadd [#allocation5], %s398
      %s401 = sshll.u32 [#allocation9], 4
      %s402 = int_to_ptr.vmem [resolvable:$true] %s401
      %404 = dma.vmem_to_hbm [thread:$0]  %s402, 128, %s4, [#allocation5]
    $region37: #{tpu_custom_call.1} parent=1 // pred_fallthru
      _
    // Predicated region
    $region38: #{tpu_custom_call.1} parent=1 // pred_check
      _
    $region39: #{tpu_custom_call.1} parent=1 // pred_check_branch
      %406 = sbr.rel (0) target = $region41
    $region40: #{tpu_custom_call.1} parent=1 // pred_region
      %407 = dma.done [#allocation5], 128
    $region41: #{tpu_custom_call.1} parent=1 // pred_fallthru
      _
    %408 = vsyncpa [#allocation4], 1
    %409 = vsyncpa [#allocation7], 1
    %410 = vsyncpa [#allocation5], 1

</llo_original>
